<compile_context>
chip_gen: v7x
topology: tpu7x:2x2x1
jax: 0.10.0
libtpu: 0.0.40
codegen_flags: <defaults>
</compile_context>

<pallas_src>
import jax
import jax.numpy as jnp
from jax.experimental import pallas as pl
from jax.experimental.pallas import tpu as pltpu


# --------------------------------------------------------------------------
# Helpers
# --------------------------------------------------------------------------
def _round_up(v, m):
    return (v + m - 1) // m * m


def _default_vmem_limit_bytes():
    """~3/4 of this chip's physical VMEM, capped at 96 MiB (v7x has 64 MiB)."""
    try:
        info = pltpu.get_tpu_info()
        return int(min((info.vmem_capacity_bytes * 3) // 4, 96 * 1024 * 1024))
    except Exception:
        return 48 * 1024 * 1024  # safe on v5e / v6e / v7x


# --------------------------------------------------------------------------
# Kernels
# --------------------------------------------------------------------------
def _fused_kernel(a_ref, x_ref, w1_ref, b1_ref, wf_ref, bf_ref, out_ref):
    """Whole encoder in one invocation (graph fits VMEM).

    H = relu((A @ X) @ W1 + b1); out = (A @ H) @ [Wmu|Wls] + [bmu|bls].
    """
    a = a_ref[...]
    ax = jnp.dot(a, x_ref[...], preferred_element_type=jnp.float32)
    h = jnp.maximum(
        jnp.dot(ax, w1_ref[...], preferred_element_type=jnp.float32) + b1_ref[...],
        0.0)
    t = jnp.dot(a, h.astype(a.dtype), preferred_element_type=jnp.float32)
    out_ref[...] = (
        jnp.dot(t, wf_ref[...], preferred_element_type=jnp.float32) + bf_ref[...]
    )


def _conv1_kernel(a_ref, x_ref, w1_ref, b1_ref, h_ref, acc_ref):
    """Row/K tile of conv1: accumulate A@X over K, finalize relu(acc@W1 + b1)."""
    k = pl.program_id(1)

    @pl.when(k == 0)
    def _init():
        acc_ref[...] = jnp.zeros_like(acc_ref)

    acc_ref[...] += jnp.dot(a_ref[...], x_ref[...],
                            preferred_element_type=jnp.float32)

    @pl.when(k == pl.num_programs(1) - 1)
    def _finalize():
        h = jnp.dot(acc_ref[...], w1_ref[...],
                    preferred_element_type=jnp.float32) + b1_ref[...]
        h_ref[...] = jnp.maximum(h, 0.0).astype(h_ref.dtype)


def _heads_kernel(a_ref, h_ref, wf_ref, bf_ref, out_ref, acc_ref):
    """Row/K tile of the fused mu/logstd heads: accumulate A@H over K, then
    one matmul against [W_mu | W_logstd] into a lane-dense (tm, 2C) slab."""
    k = pl.program_id(1)

    @pl.when(k == 0)
    def _init():
        acc_ref[...] = jnp.zeros_like(acc_ref)

    acc_ref[...] += jnp.dot(a_ref[...], h_ref[...],
                            preferred_element_type=jnp.float32)

    @pl.when(k == pl.num_programs(1) - 1)
    def _finalize():
        out_ref[...] = (
            jnp.dot(acc_ref[...], wf_ref[...],
                    preferred_element_type=jnp.float32) + bf_ref[...]
        )


# --------------------------------------------------------------------------
# Wrapper
# --------------------------------------------------------------------------
def vgae_encoder_forward(a_hat, x, params, *,
                         row_tile=256, k_tile=1024,
                         compute_dtype=jnp.bfloat16,
                         use_fused=None,
                         fused_vmem_budget=20 * 1024 * 1024,
                         vmem_limit_bytes=None):
    """VGAE encoder forward. Returns (mu, logstd), each (n, out_channels) f32."""
    n, f_in = x.shape
    c = params["w1"].shape[1]
    c2 = 2 * c

    if vmem_limit_bytes is None:
        vmem_limit_bytes = _default_vmem_limit_bytes()

    # Weights / biases stay f32 (tiny); A_hat / X / H use compute_dtype.
    w1 = params["w1"].astype(jnp.float32)
    b1 = params["b1"].reshape(1, c).astype(jnp.float32)
    w_fused = jnp.concatenate(
        [params["w_mu"], params["w_logstd"]], axis=1).astype(jnp.float32)
    b_fused = jnp.concatenate(
        [params["b_mu"], params["b_logstd"]]).reshape(1, c2).astype(jnp.float32)

    a_c = a_hat.astype(compute_dtype)
    x_c = x.astype(compute_dtype)
    isz = jnp.dtype(compute_dtype).itemsize

    # ------------------------------------------------------------------
    # Path 1: whole problem fits VMEM -> single pallas_call, no HBM H.
    # ------------------------------------------------------------------
    fused_bytes = (n * n * isz + n * f_in * isz + n * c * 4 + n * c2 * 4
                   + (f_in * c + c * c2 + c + c2) * 4)
    if use_fused is None:
        use_fused = fused_bytes <= fused_vmem_budget

    if use_fused:
        flops = 2 * (n * n * f_in + n * f_in * c + n * n * c + n * c * c2)
        out = pl.pallas_call(
            _fused_kernel,
            out_shape=jax.ShapeDtypeStruct((n, c2), jnp.float32),
            compiler_params=pltpu.CompilerParams(
                vmem_limit_bytes=vmem_limit_bytes),
            cost_estimate=pl.CostEstimate(
                flops=flops, transcendentals=0, bytes_accessed=fused_bytes),
        )(a_c, x_c, w1, b1, w_fused, b_fused)
        return out[:n, :c], out[:n, c:]

    # ------------------------------------------------------------------
    # Path 2: row + K tiled two-stage pipeline (large graphs).
    # ------------------------------------------------------------------
    tm = _round_up(min(row_tile, n), 8)      # row tile, multiple of 8
    tk = _round_up(min(k_tile, n), 128)      # contraction tile, multiple of 128
    n_r = _round_up(n, tm)                   # padded rows
    n_k = _round_up(n, tk)                   # padded contraction length
    c_pad = _round_up(c, 128)                # lane-dense H width

    # Zero padding: padded A rows/cols are zero, padded W1/b1 columns are zero,
    # padded W_fused rows are zero => padded entries never affect real rows,
    # which are sliced out at the end.
    a_p = jnp.pad(a_c, ((0, n_r - n), (0, n_k - n)))
    x_p = jnp.pad(x_c, ((0, n_k - n), (0, 0)))
    w1_p = jnp.pad(w1, ((0, 0), (0, c_pad - c)))
    b1_p = jnp.pad(b1, ((0, 0), (0, c_pad - c)))
    wf_p = jnp.pad(w_fused, ((0, c_pad - c), (0, 0)))

    grid = (n_r // tm, n_k // tk)            # row axis parallel, K axis last
    cparams = pltpu.CompilerParams(
        dimension_semantics=("parallel", "arbitrary"),
        vmem_limit_bytes=vmem_limit_bytes)
    resident = dict(pipeline_mode=pl.Buffered(1))  # single-buffer constants

    # ---- Stage 1: H = relu((A_hat @ X) @ W1 + b1) --------------------------
    flops1 = 2 * (n_r * n_k * f_in + n_r * f_in * c_pad)
    bytes1 = isz * (n_r * n_k + n_k * f_in + n_r * c_pad) + 4 * (f_in + 1) * c_pad
    h = pl.pallas_call(
        _conv1_kernel,
        out_shape=jax.ShapeDtypeStruct((n_r, c_pad), compute_dtype),
        grid=grid,
        in_specs=[
            pl.BlockSpec((tm, tk), lambda i, k: (i, k)),            # A tile
            pl.BlockSpec((tk, f_in), lambda i, k: (k, 0)),          # X K-tile
            pl.BlockSpec((f_in, c_pad), lambda i, k: (0, 0), **resident),
            pl.BlockSpec((1, c_pad), lambda i, k: (0, 0), **resident),
        ],
        out_specs=pl.BlockSpec((tm, c_pad), lambda i, k: (i, 0)),   # lane-dense
        scratch_shapes=[pltpu.VMEM((tm, f_in), jnp.float32)],
        compiler_params=cparams,
        cost_estimate=pl.CostEstimate(
            flops=flops1, transcendentals=0, bytes_accessed=bytes1),
    )(a_p, x_p, w1_p, b1_p)

    # Stage 2 streams H along the K axis: pad H rows up to n_k (zeros).
    if h.shape[0] < n_k:
        h = jnp.pad(h, ((0, n_k - h.shape[0]), (0, 0)))
    elif h.shape[0] > n_k:
        h = h[:n_k]

    # ---- Stage 2: [mu | logstd] = (A_hat @ H) @ [Wmu|Wls] + [bmu|bls] ------
    flops2 = 2 * (n_r * n_k * c_pad + n_r * c_pad * c2)
    bytes2 = isz * (n_r * n_k + n_k * c_pad) + 4 * (c_pad * c2 + c2 + n_r * c2)
    out = pl.pallas_call(
        _heads_kernel,
        out_shape=jax.ShapeDtypeStruct((n_r, c2), jnp.float32),
        grid=grid,
        in_specs=[
            pl.BlockSpec((tm, tk), lambda i, k: (i, k)),            # A tile
            pl.BlockSpec((tk, c_pad), lambda i, k: (k, 0)),         # H K-tile
            pl.BlockSpec((c_pad, c2), lambda i, k: (0, 0), **resident),
            pl.BlockSpec((1, c2), lambda i, k: (0, 0), **resident),
        ],
        out_specs=pl.BlockSpec((tm, c2), lambda i, k: (i, 0)),      # (tm, 128)
        scratch_shapes=[pltpu.VMEM((tm, c_pad), jnp.float32)],
        compiler_params=cparams,
        cost_estimate=pl.CostEstimate(
            flops=flops2, transcendentals=0, bytes_accessed=bytes2),
    )(a_p, h, wf_p, b_fused)

    return out[:n, :c], out[:n, c:]


# --------------------------------------------------------------------------
# Glue: dense normalized adjacency + params (matches PyG gcn_norm / GCNConv)
# --------------------------------------------------------------------------
def build_normalized_adjacency(edge_index, num_nodes):
    """Dense A_hat = D^{-1/2} (A + I) D^{-1/2}."""
    src, dst = edge_index[0], edge_index[1]
    loop = jnp.arange(num_nodes, dtype=edge_index.dtype)
    src = jnp.concatenate([src, loop])
    dst = jnp.concatenate([dst, loop])
    a = jnp.zeros((num_nodes, num_nodes), jnp.float32).at[dst, src].add(1.0)
    deg = a.sum(axis=1)
    d_inv_sqrt = jnp.where(deg > 0, jax.lax.rsqrt(deg), 0.0)
    return d_inv_sqrt[:, None] * a * d_inv_sqrt[None, :]


def glorot_uniform(key, fan_in, fan_out):
    limit = jnp.sqrt(6.0 / (fan_in + fan_out))
    return jax.random.uniform(key, (fan_in, fan_out), jnp.float32, -limit, limit)


def init_params(key, in_channels, out_channels):
    k1, k2, k3 = jax.random.split(key, 3)
    return {
        "w1": glorot_uniform(k1, in_channels, out_channels),
        "b1": jnp.zeros((out_channels,), jnp.float32),
        "w_mu": glorot_uniform(k2, out_channels, out_channels),
        "b_mu": jnp.zeros((out_channels,), jnp.float32),
        "w_logstd": glorot_uniform(k3, out_channels, out_channels),
        "b_logstd": jnp.zeros((out_channels,), jnp.float32),
    }


def reference_forward(a_hat, x, params):
    def gcn(h, w, b):
        return a_hat @ (h @ w) + b[None, :]
    h = jnp.maximum(gcn(x, params["w1"], params["b1"]), 0.0)
    mu = gcn(h, params["w_mu"], params["b_mu"])
    logstd = gcn(h, params["w_logstd"], params["b_logstd"])
    return mu, logstd


if __name__ == "__main__":
    NUM_NODES = 16
    IN_CHANNELS = 16
    OUT_CHANNELS = 64

    key = jax.random.PRNGKey(0)
    kx, kp = jax.random.split(key)

    # Node features (equivalent of torch.randn((num_nodes, 16))).
    x = jax.random.normal(kx, (NUM_NODES, IN_CHANNELS), jnp.float32)

    # Deterministic synthetic edge_index (bidirectional ring graph), (2, E).
    # TODO(synk): original module reads edges from RoninBridge.csv; replaced
    # with an in-script deterministic graph.
    src = jnp.arange(NUM_NODES, dtype=jnp.int32)
    dst = (src + 1) % NUM_NODES
    edge_index = jnp.concatenate(
        [jnp.stack([src, dst]), jnp.stack([dst, src])], axis=1)

    a_hat = build_normalized_adjacency(edge_index, NUM_NODES)
    params = init_params(kp, IN_CHANNELS, OUT_CHANNELS)
    mu_ref, logstd_ref = reference_forward(a_hat, x, params)

    # Exercise both paths (single-call fused and row/K-tiled) and both
    # precisions (f32 exact, bf16 fast) against the f32 reference.
    configs = [
        ("fused-f32", dict(compute_dtype=jnp.float32, use_fused=True), 1e-4),
        ("tiled-f32", dict(compute_dtype=jnp.float32, use_fused=False), 1e-4),
        ("fused-bf16", dict(compute_dtype=jnp.bfloat16, use_fused=True), 5e-2),
        ("tiled-bf16", dict(compute_dtype=jnp.bfloat16, use_fused=False), 5e-2),
    ]
    for name, kwargs, tol in configs:
        mu, logstd = vgae_encoder_forward(a_hat, x, params, **kwargs)
        jax.block_until_ready((mu, logstd))
        assert mu.shape == (NUM_NODES, OUT_CHANNELS), name
        assert logstd.shape == (NUM_NODES, OUT_CHANNELS), name
        assert jnp.allclose(mu, mu_ref, atol=tol, rtol=tol), name
        assert jnp.allclose(logstd, logstd_ref, atol=tol, rtol=tol), name

    print("KERNEL_OK")
</pallas_src>

<mosaic_0001>
module attributes {stable_mosaic.version = 11 : i64} {
  func.func @_fused_kernel(%arg0: memref<16x16xf32, #tpu.memory_space<vmem>>, %arg1: memref<16x16xf32, #tpu.memory_space<vmem>>, %arg2: memref<16x64xf32, #tpu.memory_space<vmem>>, %arg3: memref<1x64xf32, #tpu.memory_space<vmem>>, %arg4: memref<64x128xf32, #tpu.memory_space<vmem>>, %arg5: memref<1x128xf32, #tpu.memory_space<vmem>>, %arg6: memref<16x128xf32, #tpu.memory_space<vmem>>) attributes {dimension_semantics = [], scalar_prefetch = 0 : i64, scratch_operands = 0 : i64, tpu.core_type = #tpu.core_type<tc>} {
    %c0 = arith.constant 0 : index
    %c0_0 = arith.constant 0 : index
    %0 = vector.load %arg0[%c0, %c0_0] : memref<16x16xf32, #tpu.memory_space<vmem>>, vector<16x16xf32>
    %c0_1 = arith.constant 0 : index
    %c0_2 = arith.constant 0 : index
    %1 = vector.load %arg1[%c0_1, %c0_2] : memref<16x16xf32, #tpu.memory_space<vmem>>, vector<16x16xf32>
    %cst = arith.constant dense<0.000000e+00> : vector<16x16xf32>
    %2 = tpu.matmul %0, %1, %cst {dimension_numbers = #tpu.dot_dimension_numbers<[1], [0], [0], [1], [0, 0, 1, 1], [], []>} : vector<16x16xf32>, vector<16x16xf32>, vector<16x16xf32> -> vector<16x16xf32>
    %c0_3 = arith.constant 0 : index
    %c0_4 = arith.constant 0 : index
    %3 = vector.load %arg2[%c0_3, %c0_4] : memref<16x64xf32, #tpu.memory_space<vmem>>, vector<16x64xf32>
    %cst_5 = arith.constant dense<0.000000e+00> : vector<16x64xf32>
    %4 = tpu.matmul %2, %3, %cst_5 {dimension_numbers = #tpu.dot_dimension_numbers<[1], [0], [0], [1], [0, 0, 1, 1], [], []>} : vector<16x16xf32>, vector<16x64xf32>, vector<16x64xf32> -> vector<16x64xf32>
    %c0_6 = arith.constant 0 : index
    %c0_7 = arith.constant 0 : index
    %5 = vector.load %arg3[%c0_6, %c0_7] : memref<1x64xf32, #tpu.memory_space<vmem>>, vector<1x64xf32>
    %6 = vector.broadcast %5 : vector<1x64xf32> to vector<16x64xf32>
    %7 = arith.addf %4, %6 : vector<16x64xf32>
    %cst_8 = arith.constant 0.000000e+00 : f32
    %8 = vector.broadcast %cst_8 : f32 to vector<16x64xf32>
    %9 = arith.maximumf %7, %8 : vector<16x64xf32>
    %cst_9 = arith.constant dense<0.000000e+00> : vector<16x64xf32>
    %10 = tpu.matmul %0, %9, %cst_9 {dimension_numbers = #tpu.dot_dimension_numbers<[1], [0], [0], [1], [0, 0, 1, 1], [], []>} : vector<16x16xf32>, vector<16x64xf32>, vector<16x64xf32> -> vector<16x64xf32>
    %c0_10 = arith.constant 0 : index
    %c0_11 = arith.constant 0 : index
    %11 = vector.load %arg4[%c0_10, %c0_11] : memref<64x128xf32, #tpu.memory_space<vmem>>, vector<64x128xf32>
    %cst_12 = arith.constant dense<0.000000e+00> : vector<16x128xf32>
    %12 = tpu.matmul %10, %11, %cst_12 {dimension_numbers = #tpu.dot_dimension_numbers<[1], [0], [0], [1], [0, 0, 1, 1], [], []>} : vector<16x64xf32>, vector<64x128xf32>, vector<16x128xf32> -> vector<16x128xf32>
    %c0_13 = arith.constant 0 : index
    %c0_14 = arith.constant 0 : index
    %13 = vector.load %arg5[%c0_13, %c0_14] : memref<1x128xf32, #tpu.memory_space<vmem>>, vector<1x128xf32>
    %14 = vector.broadcast %13 : vector<1x128xf32> to vector<16x128xf32>
    %15 = arith.addf %12, %14 : vector<16x128xf32>
    %c0_15 = arith.constant 0 : index
    %c0_16 = arith.constant 0 : index
    %16 = vector.load %arg6[%c0_15, %c0_16] : memref<16x128xf32, #tpu.memory_space<vmem>>, vector<16x128xf32>
    tpu.vector_store %arg6[%c0_15, %c0_16], %15 {strides = array<i32>} : memref<16x128xf32, #tpu.memory_space<vmem>>, vector<16x128xf32>,
    return
  }
}

</mosaic_0001>

<llo_original>
// kernel: tpu_custom_call.1
$region0: #{tpu_custom_call.1}
  #allocation0 [shape = 'u32[]', space=smem, size = 0x4, offset = 0x4, fixed_abs, tag = 'smem constant byte address 0x4 - core index']
  #allocation1 [shape = 'u32[144,128]{1,0:T(1,128)}', space=vmem, size = 0x12000, scoped, tag = 'internal scratch']
  %s0 = inlined_call_operand.hbm [shape: f32[16,16], index: 0, kind: input, shape index: {}]
  %s1 = inlined_call_operand.hbm [shape: f32[16,16], index: 1, kind: input, shape index: {}]
  %s2 = inlined_call_operand.hbm [shape: f32[16,64], index: 2, kind: input, shape index: {}]
  %s3 = inlined_call_operand.vmem [shape: f32[1,64], index: 3, kind: input, shape index: {}]
  %s4 = inlined_call_operand.hbm [shape: f32[64,128], index: 4, kind: input, shape index: {}]
  %s5 = inlined_call_operand.vmem [shape: f32[1,128], index: 5, kind: input, shape index: {}]
  %s6 = inlined_call_operand.hbm [shape: f32[16,128], index: 6, kind: output, shape index: {}]
  %s7 = sld [smem:[#allocation0]]
  $region50: #{tpu_custom_call.1} parent=0
    _
  %s9 = ssub.s32 1, %s7
  %s10 = scalar_select 0, %s9, %s7
  $region1: #{tpu_custom_call.1} parent=0
    #allocation2 [shape = 'u8[8192]{0}', space=vmem, size = 0x2000, scoped, tag = 'input window, operand 0, single buffered']
    #allocation3 [shape = 's32[1]{0}', space=sflag, size = 0x4, scoped, tag = 'scoped memory for tpu_custom_call.1']
    #allocation4 [shape = 's32[1]{0}', space=sflag, size = 0x4, scoped, tag = 'scoped memory for tpu_custom_call.1']
    #allocation5 [shape = 'u8[8192]{0}', space=vmem, size = 0x2000, scoped, tag = 'input window, operand 1, single buffered']
    #allocation6 [shape = 's32[1]{0}', space=sflag, size = 0x4, scoped, tag = 'scoped memory for tpu_custom_call.1']
    #allocation7 [shape = 'u8[8192]{0}', space=vmem, size = 0x2000, scoped, tag = 'input window, operand 2, single buffered']
    #allocation8 [shape = 'u8[32768]{0}', space=vmem, size = 0x8000, scoped, tag = 'input window, operand 4, single buffered']
    #allocation9 [shape = 's32[1]{0}', space=sflag, size = 0x4, scoped, tag = 'scoped memory for tpu_custom_call.1']
    #allocation10 [shape = 'u8[8192]{0}', space=vmem, size = 0x2000, scoped, tag = 'output window, operand 0, single buffered']
    %11 = vsyncpa [#allocation3], 0
    %12 = vsyncpa [#allocation6], 0
    %13 = vsyncpa [#allocation9], 0
    %14 = vsyncpa [#allocation4], 0
    // Predicated region
    $region2: #{tpu_custom_call.1} parent=1 // pred_check
      _
    $region3: #{tpu_custom_call.1} parent=1 // pred_check_branch
      %16 = sbr.rel (0) target = $region5
    $region4: #{tpu_custom_call.1} parent=1 // pred_region
      %s18 = ssub.s32 256, 256
      %19 = vsyncadd [#allocation3], %s18
      %s20 = sshll.u32 [#allocation2], 4
      %s21 = int_to_ptr.vmem [resolvable:$true] %s20
      %26 = dma.hbm_to_vmem [thread:$0]  %s0, 256, %s21, [#allocation3], 128, 128, 8
    $region5: #{tpu_custom_call.1} parent=1 // pred_fallthru
      _
    // Predicated region
    $region6: #{tpu_custom_call.1} parent=1 // pred_check
      _
    $region7: #{tpu_custom_call.1} parent=1 // pred_check_branch
      %28 = sbr.rel (0) target = $region9
    $region8: #{tpu_custom_call.1} parent=1 // pred_region
      %s30 = ssub.s32 256, 256
      %31 = vsyncadd [#allocation6], %s30
      %s32 = sshll.u32 [#allocation5], 4
      %s33 = int_to_ptr.vmem [resolvable:$true] %s32
      %38 = dma.hbm_to_vmem [thread:$0]  %s1, 256, %s33, [#allocation6], 128, 128, 8
    $region9: #{tpu_custom_call.1} parent=1 // pred_fallthru
      _
    // Predicated region
    $region10: #{tpu_custom_call.1} parent=1 // pred_check
      _
    $region11: #{tpu_custom_call.1} parent=1 // pred_check_branch
      %40 = sbr.rel (0) target = $region13
    $region12: #{tpu_custom_call.1} parent=1 // pred_region
      %s42 = ssub.s32 256, 256
      %43 = vsyncadd [#allocation6], %s42
      %s44 = sshll.u32 [#allocation7], 4
      %s45 = int_to_ptr.vmem [resolvable:$true] %s44
      %50 = dma.hbm_to_vmem [thread:$0]  %s2, 256, %s45, [#allocation6], 128, 128, 8
    $region13: #{tpu_custom_call.1} parent=1 // pred_fallthru
      _
    // Predicated region
    $region14: #{tpu_custom_call.1} parent=1 // pred_check
      _
    $region15: #{tpu_custom_call.1} parent=1 // pred_check_branch
      %52 = sbr.rel (0) target = $region17
    $region16: #{tpu_custom_call.1} parent=1 // pred_region
      _
    $region17: #{tpu_custom_call.1} parent=1 // pred_fallthru
      _
    // Predicated region
    $region18: #{tpu_custom_call.1} parent=1 // pred_check
      _
    $region19: #{tpu_custom_call.1} parent=1 // pred_check_branch
      %54 = sbr.rel (0) target = $region21
    $region20: #{tpu_custom_call.1} parent=1 // pred_region
      %s56 = ssub.s32 1024, 1024
      %57 = vsyncadd [#allocation9], %s56
      %s58 = sshll.u32 [#allocation8], 4
      %s59 = int_to_ptr.vmem [resolvable:$true] %s58
      %64 = dma.hbm_to_vmem [thread:$0]  %s4, 1024, %s59, [#allocation9], 128, 128, 8
    $region21: #{tpu_custom_call.1} parent=1 // pred_fallthru
      _
    // Predicated region
    $region22: #{tpu_custom_call.1} parent=1 // pred_check
      _
    $region23: #{tpu_custom_call.1} parent=1 // pred_check_branch
      %66 = sbr.rel (0) target = $region25
    $region24: #{tpu_custom_call.1} parent=1 // pred_region
      _
    $region25: #{tpu_custom_call.1} parent=1 // pred_fallthru
      _
    // Predicated region
    $region26: #{tpu_custom_call.1} parent=1 // pred_check
      _
    $region27: #{tpu_custom_call.1} parent=1 // pred_check_branch
      %68 = sbr.rel (0) target = $region29
    $region28: #{tpu_custom_call.1} parent=1 // pred_region
      %69 = dma.done [#allocation3], 256
    $region29: #{tpu_custom_call.1} parent=1 // pred_fallthru
      _
    // Predicated region
    $region30: #{tpu_custom_call.1} parent=1 // pred_check
      _
    $region31: #{tpu_custom_call.1} parent=1 // pred_check_branch
      %71 = sbr.rel (0) target = $region33
    $region32: #{tpu_custom_call.1} parent=1 // pred_region
      %72 = dma.done [#allocation6], 256
    $region33: #{tpu_custom_call.1} parent=1 // pred_fallthru
      _
    // Predicated region
    $region34: #{tpu_custom_call.1} parent=1 // pred_check
      _
    $region35: #{tpu_custom_call.1} parent=1 // pred_check_branch
      %74 = sbr.rel (0) target = $region37
    $region36: #{tpu_custom_call.1} parent=1 // pred_region
      %75 = dma.done [#allocation6], 256
    $region37: #{tpu_custom_call.1} parent=1 // pred_fallthru
      _
    // Predicated region
    $region38: #{tpu_custom_call.1} parent=1 // pred_check
      _
    $region39: #{tpu_custom_call.1} parent=1 // pred_check_branch
      %77 = sbr.rel (0) target = $region41
    $region40: #{tpu_custom_call.1} parent=1 // pred_region
      %78 = dma.done [#allocation9], 1024
    $region41: #{tpu_custom_call.1} parent=1 // pred_fallthru
      _
    %v79 = vld [vmem:[#allocation2] sm:$0xff]
    %v80 = vld [vmem:[#allocation2 + $0x8] sm:$0xff]
    %v81 = vld [vmem:[#allocation5] sm:$0xff]
    %v82 = vld [vmem:[#allocation5 + $0x8] sm:$0xff]
    %vm83 = vcmask 130048
    %v85 = vsel %vm83, %v79, 0
    %v88 = vsel %vm83, %v80, 0
    %90 = vmatprep.subr.mxu0 0.0
    %91 = vmatpush1.msra.mxu0 %v81
    %92 = vmatprep.subr.mxu0 0.0
    %93 = vmatpush1.msra.mxu0 %v82
    %94 = vmatprep.subr.mxu0 0.0
    %95 = vmatpush1.msra.mxu0 0.0
    %96 = vmatprep.subr.mxu0 0.0
    %97 = vmatpush1.msra.mxu0 0.0
    %98 = vmatprep.subr.mxu0 0.0
    %99 = vmatpush1.msra.mxu0 0.0
    %100 = vmatprep.subr.mxu0 0.0
    %101 = vmatpush1.msra.mxu0 0.0
    %102 = vmatprep.subr.mxu0 0.0
    %103 = vmatpush1.msra.mxu0 0.0
    %104 = vmatprep.subr.mxu0 0.0
    %105 = vmatpush1.msra.mxu0 0.0
    %106 = vmatprep.subr.mxu0 0.0
    %107 = vmatpush1.msra.mxu0 0.0
    %108 = vmatprep.subr.mxu0 0.0
    %109 = vmatpush1.msra.mxu0 0.0
    %110 = vmatprep.subr.mxu0 0.0
    %111 = vmatpush1.msra.mxu0 0.0
    %112 = vmatprep.subr.mxu0 0.0
    %113 = vmatpush1.msra.mxu0 0.0
    %114 = vmatprep.subr.mxu0 0.0
    %115 = vmatpush1.msra.mxu0 0.0
    %116 = vmatprep.subr.mxu0 0.0
    %117 = vmatpush1.msra.mxu0 0.0
    %118 = vmatprep.subr.mxu0 0.0
    %119 = vmatpush1.msra.mxu0 0.0
    %120 = vmatprep.subr.mxu0 0.0
    %121 = vmatpush1.msra.mxu0 0.0
    %122 = vmatprep.subr.mxu0 0.0
    %123 = vmatpush1.msra.mxu0 0.0
    %124 = vmatprep.subr.mxu0 0.0
    %125 = vmatpush1.msra.mxu0 0.0
    %126 = vmatprep.subr.mxu0 0.0
    %127 = vmatpush1.msra.mxu0 0.0
    %128 = vmatprep.subr.mxu0 0.0
    %129 = vmatpush1.msra.mxu0 0.0
    %130 = vmatprep.subr.mxu0 0.0
    %131 = vmatpush1.msra.mxu0 0.0
    %132 = vmatprep.subr.mxu0 0.0
    %133 = vmatpush1.msra.mxu0 0.0
    %134 = vmatprep.subr.mxu0 0.0
    %135 = vmatpush1.msra.mxu0 0.0
    %136 = vmatprep.subr.mxu0 0.0
    %137 = vmatpush1.msra.mxu0 0.0
    %138 = vmatprep.subr.mxu0 0.0
    %139 = vmatpush1.msra.mxu0 0.0
    %140 = vmatprep.subr.mxu0 0.0
    %141 = vmatpush1.msra.mxu0 0.0
    %142 = vmatprep.subr.mxu0 0.0
    %143 = vmatpush1.msra.mxu0 0.0
    %144 = vmatprep.subr.mxu0 0.0
    %145 = vmatpush1.msra.mxu0 0.0
    %146 = vmatprep.subr.mxu0 0.0
    %147 = vmatpush1.msra.mxu0 0.0
    %148 = vmatprep.subr.mxu0 0.0
    %149 = vmatpush1.msra.mxu0 0.0
    %150 = vmatprep.subr.mxu0 0.0
    %151 = vmatpush1.msra.mxu0 0.0
    %152 = vmatprep.subr.mxu0 0.0
    %153 = vmatpush1.msra.mxu0 0.0
    %154 = vmatprep.mubr.f32.mxu0 0.0
    %155 = vmatmul.mubr.f32.gmra.mrb[0].mxu0 %v85
    %v156 = vpop.f32.mrb[0].mxu0
    %v157 = vadd.f32 0.0, %v156
    %v158 = vpop.f32.mrb[0].mxu0
    %159 = vmatprep.mubr.f32.mxu0 0.0
    %160 = vmatmul.mubr.f32.gmra.mrb[0].mxu0 %v88
    %v161 = vpop.f32.mrb[0].mxu0
    %v162 = vadd.f32 0.0, %v161
    %v163 = vpop.f32.mrb[0].mxu0
    %164 = vdwg.mxu0
    %v165 = vld [vmem:[#allocation7] sm:$0xff]
    %v166 = vld [vmem:[#allocation7 + $0x8] sm:$0xff]
    %v167 = vld [vmem:[%s3] sm:$0x1]
    %v169 = vlaneseq
    %v170 = vshrl.u32 %v169, 7
    %v171 = vsub.s32 0, %v170
    %v172 = vrot.slane %v167, %v171
    %v175 = vsel %vm83, %v157, 0
    %v178 = vsel %vm83, %v162, 0
    %180 = vmatprep.subr.mxu0 0.0
    %181 = vmatpush1.msra.mxu0 %v165
    %182 = vmatprep.subr.mxu0 0.0
    %183 = vmatpush1.msra.mxu0 %v166
    %184 = vmatprep.subr.mxu0 0.0
    %185 = vmatpush1.msra.mxu0 0.0
    %186 = vmatprep.subr.mxu0 0.0
    %187 = vmatpush1.msra.mxu0 0.0
    %188 = vmatprep.subr.mxu0 0.0
    %189 = vmatpush1.msra.mxu0 0.0
    %190 = vmatprep.subr.mxu0 0.0
    %191 = vmatpush1.msra.mxu0 0.0
    %192 = vmatprep.subr.mxu0 0.0
    %193 = vmatpush1.msra.mxu0 0.0
    %194 = vmatprep.subr.mxu0 0.0
    %195 = vmatpush1.msra.mxu0 0.0
    %196 = vmatprep.subr.mxu0 0.0
    %197 = vmatpush1.msra.mxu0 0.0
    %198 = vmatprep.subr.mxu0 0.0
    %199 = vmatpush1.msra.mxu0 0.0
    %200 = vmatprep.subr.mxu0 0.0
    %201 = vmatpush1.msra.mxu0 0.0
    %202 = vmatprep.subr.mxu0 0.0
    %203 = vmatpush1.msra.mxu0 0.0
    %204 = vmatprep.subr.mxu0 0.0
    %205 = vmatpush1.msra.mxu0 0.0
    %206 = vmatprep.subr.mxu0 0.0
    %207 = vmatpush1.msra.mxu0 0.0
    %208 = vmatprep.subr.mxu0 0.0
    %209 = vmatpush1.msra.mxu0 0.0
    %210 = vmatprep.subr.mxu0 0.0
    %211 = vmatpush1.msra.mxu0 0.0
    %212 = vmatprep.subr.mxu0 0.0
    %213 = vmatpush1.msra.mxu0 0.0
    %214 = vmatprep.subr.mxu0 0.0
    %215 = vmatpush1.msra.mxu0 0.0
    %216 = vmatprep.subr.mxu0 0.0
    %217 = vmatpush1.msra.mxu0 0.0
    %218 = vmatprep.subr.mxu0 0.0
    %219 = vmatpush1.msra.mxu0 0.0
    %220 = vmatprep.subr.mxu0 0.0
    %221 = vmatpush1.msra.mxu0 0.0
    %222 = vmatprep.subr.mxu0 0.0
    %223 = vmatpush1.msra.mxu0 0.0
    %224 = vmatprep.subr.mxu0 0.0
    %225 = vmatpush1.msra.mxu0 0.0
    %226 = vmatprep.subr.mxu0 0.0
    %227 = vmatpush1.msra.mxu0 0.0
    %228 = vmatprep.subr.mxu0 0.0
    %229 = vmatpush1.msra.mxu0 0.0
    %230 = vmatprep.subr.mxu0 0.0
    %231 = vmatpush1.msra.mxu0 0.0
    %232 = vmatprep.subr.mxu0 0.0
    %233 = vmatpush1.msra.mxu0 0.0
    %234 = vmatprep.subr.mxu0 0.0
    %235 = vmatpush1.msra.mxu0 0.0
    %236 = vmatprep.subr.mxu0 0.0
    %237 = vmatpush1.msra.mxu0 0.0
    %238 = vmatprep.subr.mxu0 0.0
    %239 = vmatpush1.msra.mxu0 0.0
    %240 = vmatprep.subr.mxu0 0.0
    %241 = vmatpush1.msra.mxu0 0.0
    %242 = vmatprep.subr.mxu0 0.0
    %243 = vmatpush1.msra.mxu0 0.0
    %244 = vmatprep.mubr.f32.mxu0 0.0
    %245 = vmatmul.mubr.f32.gmra.mrb[0].mxu0 %v175
    %v246 = vpop.f32.mrb[0].mxu0
    %v247 = vadd.f32 %v172, %v246
    %v248 = vpop.f32.mrb[0].mxu0
    %249 = vmatprep.mubr.f32.mxu0 0.0
    %250 = vmatmul.mubr.f32.gmra.mrb[0].mxu0 %v178
    %v251 = vpop.f32.mrb[0].mxu0
    %v252 = vadd.f32 %v172, %v251
    %v253 = vpop.f32.mrb[0].mxu0
    %254 = vdwg.mxu0
    %v255 = vmax.f32 %v247, 0.0
    %v256 = vmax.f32 %v252, 0.0
    %257 = vmatprep.subr.mxu0 0.0
    %258 = vmatpush1.msra.mxu0 %v255
    %259 = vmatprep.subr.mxu0 0.0
    %260 = vmatpush1.msra.mxu0 %v256
    %261 = vmatprep.subr.mxu0 0.0
    %262 = vmatpush1.msra.mxu0 0.0
    %263 = vmatprep.subr.mxu0 0.0
    %264 = vmatpush1.msra.mxu0 0.0
    %265 = vmatprep.subr.mxu0 0.0
    %266 = vmatpush1.msra.mxu0 0.0
    %267 = vmatprep.subr.mxu0 0.0
    %268 = vmatpush1.msra.mxu0 0.0
    %269 = vmatprep.subr.mxu0 0.0
    %270 = vmatpush1.msra.mxu0 0.0
    %271 = vmatprep.subr.mxu0 0.0
    %272 = vmatpush1.msra.mxu0 0.0
    %273 = vmatprep.subr.mxu0 0.0
    %274 = vmatpush1.msra.mxu0 0.0
    %275 = vmatprep.subr.mxu0 0.0
    %276 = vmatpush1.msra.mxu0 0.0
    %277 = vmatprep.subr.mxu0 0.0
    %278 = vmatpush1.msra.mxu0 0.0
    %279 = vmatprep.subr.mxu0 0.0
    %280 = vmatpush1.msra.mxu0 0.0
    %281 = vmatprep.subr.mxu0 0.0
    %282 = vmatpush1.msra.mxu0 0.0
    %283 = vmatprep.subr.mxu0 0.0
    %284 = vmatpush1.msra.mxu0 0.0
    %285 = vmatprep.subr.mxu0 0.0
    %286 = vmatpush1.msra.mxu0 0.0
    %287 = vmatprep.subr.mxu0 0.0
    %288 = vmatpush1.msra.mxu0 0.0
    %289 = vmatprep.subr.mxu0 0.0
    %290 = vmatpush1.msra.mxu0 0.0
    %291 = vmatprep.subr.mxu0 0.0
    %292 = vmatpush1.msra.mxu0 0.0
    %293 = vmatprep.subr.mxu0 0.0
    %294 = vmatpush1.msra.mxu0 0.0
    %295 = vmatprep.subr.mxu0 0.0
    %296 = vmatpush1.msra.mxu0 0.0
    %297 = vmatprep.subr.mxu0 0.0
    %298 = vmatpush1.msra.mxu0 0.0
    %299 = vmatprep.subr.mxu0 0.0
    %300 = vmatpush1.msra.mxu0 0.0
    %301 = vmatprep.subr.mxu0 0.0
    %302 = vmatpush1.msra.mxu0 0.0
    %303 = vmatprep.subr.mxu0 0.0
    %304 = vmatpush1.msra.mxu0 0.0
    %305 = vmatprep.subr.mxu0 0.0
    %306 = vmatpush1.msra.mxu0 0.0
    %307 = vmatprep.subr.mxu0 0.0
    %308 = vmatpush1.msra.mxu0 0.0
    %309 = vmatprep.subr.mxu0 0.0
    %310 = vmatpush1.msra.mxu0 0.0
    %311 = vmatprep.subr.mxu0 0.0
    %312 = vmatpush1.msra.mxu0 0.0
    %313 = vmatprep.subr.mxu0 0.0
    %314 = vmatpush1.msra.mxu0 0.0
    %315 = vmatprep.subr.mxu0 0.0
    %316 = vmatpush1.msra.mxu0 0.0
    %317 = vmatprep.subr.mxu0 0.0
    %318 = vmatpush1.msra.mxu0 0.0
    %319 = vmatprep.subr.mxu0 0.0
    %320 = vmatpush1.msra.mxu0 0.0
    %321 = vmatprep.mubr.f32.mxu0 0.0
    %322 = vmatmul.mubr.f32.gmra.mrb[0].mxu0 %v85
    %v323 = vpop.f32.mrb[0].mxu0
    %v324 = vadd.f32 0.0, %v323
    %v325 = vpop.f32.mrb[0].mxu0
    %326 = vmatprep.mubr.f32.mxu0 0.0
    %327 = vmatmul.mubr.f32.gmra.mrb[0].mxu0 %v88
    %v328 = vpop.f32.mrb[0].mxu0
    %v329 = vadd.f32 0.0, %v328
    %v330 = vpop.f32.mrb[0].mxu0
    %331 = vdwg.mxu0
    %v332 = vld [vmem:[#allocation8] sm:$0xff]
    %v333 = vld [vmem:[#allocation8 + $0x8] sm:$0xff]
    %v334 = vld [vmem:[#allocation8 + $0x10] sm:$0xff]
    %v335 = vld [vmem:[#allocation8 + $0x18] sm:$0xff]
    %v336 = vld [vmem:[#allocation8 + $0x20] sm:$0xff]
    %v337 = vld [vmem:[#allocation8 + $0x28] sm:$0xff]
    %v338 = vld [vmem:[#allocation8 + $0x30] sm:$0xff]
    %v339 = vld [vmem:[#allocation8 + $0x38] sm:$0xff]
    %v340 = vld [vmem:[%s5] sm:$0x1]
    %v342 = vlaneseq
    %v343 = vshrl.u32 %v342, 7
    %v344 = vsub.s32 0, %v343
    %v345 = vrot.slane %v340, %v344
    %vm347 = vcmask 523264
    %v349 = vsel %vm347, %v324, 0
    %v352 = vsel %vm347, %v329, 0
    %354 = vmatprep.subr.mxu0 0.0
    %355 = vmatpush1.msra.mxu0 %v332
    %356 = vmatprep.subr.mxu0 0.0
    %357 = vmatpush1.msra.mxu0 %v333
    %358 = vmatprep.subr.mxu0 0.0
    %359 = vmatpush1.msra.mxu0 %v334
    %360 = vmatprep.subr.mxu0 0.0
    %361 = vmatpush1.msra.mxu0 %v335
    %362 = vmatprep.subr.mxu0 0.0
    %363 = vmatpush1.msra.mxu0 %v336
    %364 = vmatprep.subr.mxu0 0.0
    %365 = vmatpush1.msra.mxu0 %v337
    %366 = vmatprep.subr.mxu0 0.0
    %367 = vmatpush1.msra.mxu0 %v338
    %368 = vmatprep.subr.mxu0 0.0
    %369 = vmatpush1.msra.mxu0 %v339
    %370 = vmatprep.subr.mxu0 0.0
    %371 = vmatpush1.msra.mxu0 0.0
    %372 = vmatprep.subr.mxu0 0.0
    %373 = vmatpush1.msra.mxu0 0.0
    %374 = vmatprep.subr.mxu0 0.0
    %375 = vmatpush1.msra.mxu0 0.0
    %376 = vmatprep.subr.mxu0 0.0
    %377 = vmatpush1.msra.mxu0 0.0
    %378 = vmatprep.subr.mxu0 0.0
    %379 = vmatpush1.msra.mxu0 0.0
    %380 = vmatprep.subr.mxu0 0.0
    %381 = vmatpush1.msra.mxu0 0.0
    %382 = vmatprep.subr.mxu0 0.0
    %383 = vmatpush1.msra.mxu0 0.0
    %384 = vmatprep.subr.mxu0 0.0
    %385 = vmatpush1.msra.mxu0 0.0
    %386 = vmatprep.subr.mxu0 0.0
    %387 = vmatpush1.msra.mxu0 0.0
    %388 = vmatprep.subr.mxu0 0.0
    %389 = vmatpush1.msra.mxu0 0.0
    %390 = vmatprep.subr.mxu0 0.0
    %391 = vmatpush1.msra.mxu0 0.0
    %392 = vmatprep.subr.mxu0 0.0
    %393 = vmatpush1.msra.mxu0 0.0
    %394 = vmatprep.subr.mxu0 0.0
    %395 = vmatpush1.msra.mxu0 0.0
    %396 = vmatprep.subr.mxu0 0.0
    %397 = vmatpush1.msra.mxu0 0.0
    %398 = vmatprep.subr.mxu0 0.0
    %399 = vmatpush1.msra.mxu0 0.0
    %400 = vmatprep.subr.mxu0 0.0
    %401 = vmatpush1.msra.mxu0 0.0
    %402 = vmatprep.subr.mxu0 0.0
    %403 = vmatpush1.msra.mxu0 0.0
    %404 = vmatprep.subr.mxu0 0.0
    %405 = vmatpush1.msra.mxu0 0.0
    %406 = vmatprep.subr.mxu0 0.0
    %407 = vmatpush1.msra.mxu0 0.0
    %408 = vmatprep.subr.mxu0 0.0
    %409 = vmatpush1.msra.mxu0 0.0
    %410 = vmatprep.subr.mxu0 0.0
    %411 = vmatpush1.msra.mxu0 0.0
    %412 = vmatprep.subr.mxu0 0.0
    %413 = vmatpush1.msra.mxu0 0.0
    %414 = vmatprep.subr.mxu0 0.0
    %415 = vmatpush1.msra.mxu0 0.0
    %416 = vmatprep.subr.mxu0 0.0
    %417 = vmatpush1.msra.mxu0 0.0
    %418 = vmatprep.mubr.f32.mxu0 0.0
    %419 = vmatmul.mubr.f32.gmra.mrb[0].mxu0 %v349
    %v420 = vpop.f32.mrb[0].mxu0
    %v421 = vadd.f32 %v345, %v420
    %v422 = vpop.f32.mrb[0].mxu0
    %423 = vmatprep.mubr.f32.mxu0 0.0
    %424 = vmatmul.mubr.f32.gmra.mrb[0].mxu0 %v352
    %v425 = vpop.f32.mrb[0].mxu0
    %v426 = vadd.f32 %v345, %v425
    %v427 = vpop.f32.mrb[0].mxu0
    %428 = vdwg.mxu0
    %429 = vst [vmem:[#allocation10] sm:$0xff] %v421
    %430 = vst [vmem:[#allocation10 + $0x8] sm:$0xff] %v426
    // Predicated region
    $region42: #{tpu_custom_call.1} parent=1 // pred_check
      _
    $region43: #{tpu_custom_call.1} parent=1 // pred_check_branch
      %432 = sbr.rel (0) target = $region45
    $region44: #{tpu_custom_call.1} parent=1 // pred_region
      %s434 = ssub.s32 256, 256
      %435 = vsyncadd [#allocation4], %s434
      %s436 = sshll.u32 [#allocation10], 4
      %s437 = int_to_ptr.vmem [resolvable:$true] %s436
      %442 = dma.vmem_to_hbm [thread:$0]  %s437, 256, %s6, [#allocation4], 128, 128, 8
    $region45: #{tpu_custom_call.1} parent=1 // pred_fallthru
      _
    // Predicated region
    $region46: #{tpu_custom_call.1} parent=1 // pred_check
      _
    $region47: #{tpu_custom_call.1} parent=1 // pred_check_branch
      %444 = sbr.rel (0) target = $region49
    $region48: #{tpu_custom_call.1} parent=1 // pred_region
      %445 = dma.done [#allocation4], 256
    $region49: #{tpu_custom_call.1} parent=1 // pred_fallthru
      _
    %446 = vsyncpa [#allocation3], 1
    %447 = vsyncpa [#allocation6], 1
    %448 = vsyncpa [#allocation9], 1
    %449 = vsyncpa [#allocation4], 1

</llo_original>
